<compile_context>
chip_gen: v5e
topology: v5e:2x2
jax: 0.10.0
libtpu: 0.0.40
codegen_flags: <defaults>
</compile_context>

<pallas_src>
import jax
import jax.numpy as jnp
from jax.experimental import pallas as pl
from jax.experimental.pallas import tpu as pltpu


def _make_conv_bn_silu_kernel(tile_h, K):
    """Kernel closed over static sizes.

    Per grid step (n, t):
      x_ref:     (tile_h + 2*pad, WCin_p)  activation row band incl. H halo
      w_ref:     (K*WCin_p, WCout)         banded conv weight, kh taps folded
                                           into the contraction
      scale_ref: (1, WCout) f32            folded BN scale (per output column)
      bias_ref:  (1, WCout) f32            folded BN bias
      o_ref:     (tile_h, WCout)           lane-dense output rows
    """

    def kernel(x_ref, w_ref, scale_ref, bias_ref, o_ref):
        x = x_ref[...]                                  # (tile_h + 2p, WCin_p)
        # Fold the K kh taps into the MXU contraction: LHS (tile_h, K*WCin_p).
        # Per-tap data motion is only a sublane (H) shift of the row band.
        lhs = jnp.concatenate([x[kh:kh + tile_h, :] for kh in range(K)],
                              axis=1)
        # One deep-contraction matmul per tile, f32 accumulation.
        y = jnp.dot(lhs, w_ref[...], preferred_element_type=jnp.float32)
        # Folded BatchNorm (running stats) + SiLU epilogue, in f32.
        y = y * scale_ref[...] + bias_ref[...]
        o_ref[...] = (y * jax.nn.sigmoid(y)).astype(o_ref.dtype)

    return kernel


def _maybe_single_buffered_spec(block_shape, index_map, single_buffer):
    """BlockSpec; grid-invariant blocks get pl.Buffered(1) when supported."""
    if single_buffer and hasattr(pl, "Buffered"):
        try:
            return pl.BlockSpec(block_shape, index_map,
                                pipeline_mode=pl.Buffered(1))
        except TypeError:       # older jax without the pipeline_mode kwarg
            pass
    return pl.BlockSpec(block_shape, index_map)


def conv_bn_silu(x_nchw, weight_oihw, gamma, beta, running_mean, running_var,
                 eps=1e-5, *, tile_h=None, compute_dtype=jnp.float32,
                 out_dtype=None, nchw_out=True):
    """Forward pass of Conv (conv k=3 s=1 'same' + BN(eval) + SiLU), NCHW API."""
    N, Cin, H, W = x_nchw.shape
    Cout, Cin_w, K, K2 = weight_oihw.shape
    assert Cin_w == Cin and K == K2 and K % 2 == 1, "groups=1, odd square k only"
    p = K // 2                                     # autopad(k, None, 1)

    WCin, WCout = W * Cin, W * Cout
    # Banded-weight path only for small row widths (detection-head maps).
    # TODO(synk): block-banded (W-tiled) weight + W-halo LHS for large W*Cin.
    assert WCin <= 512, "banded-weight path requires W*Cin <= 512"

    # Lane-dense LHS: pad the W*Cin row width up to a multiple of 128.
    WCin_p = -(-WCin // 128) * 128
    lane_pad = WCin_p - WCin
    out_dtype = compute_dtype if out_dtype is None else out_dtype

    # ---- tile_h: whole-H by default (no halo replication, no overlap); keep
    #      tile_h*WCout within a ~32K f32 accumulator budget (vreg pressure).
    if tile_h is None:
        max_rows = max(8, (32 * 1024) // WCout)
        if H <= max_rows:
            tile_h = H
        else:
            divs = [d for d in range(8, max_rows + 1, 8) if H % d == 0]
            # TODO(synk): ragged-H tiling (masked tail tile) when H has no
            # suitable divisor; whole-H fallback is correct but vreg-heavy.
            tile_h = max(divs) if divs else H
    assert tile_h == H or (H % tile_h == 0 and tile_h % 8 == 0)
    n_t = H // tile_h
    band_h = tile_h + 2 * p

    # ---- activations: NCHW -> (N, H, W*Cin) rows (single layout pass).
    x_rows = jnp.transpose(x_nchw, (0, 2, 3, 1)).reshape(N, H, WCin)
    if n_t == 1:
        # Whole-H tile: 'same' H padding + lane padding folded into one
        # jnp.pad.  No banded gather, no inflated extra HBM copy.
        x_feed = jnp.pad(x_rows, ((0, 0), (p, p), (0, lane_pad)))
        x_feed = x_feed.astype(compute_dtype)            # (N, H+2p, WCin_p)
        x_spec = pl.BlockSpec((None, band_h, WCin_p), lambda n, t: (n, 0, 0))
    else:
        # Large-H fallback: overlapping row bands via a clipped gather; with a
        # large 8-aligned tile_h the 2p halo replication stays <2%.
        if lane_pad:
            x_rows = jnp.pad(x_rows, ((0, 0), (0, 0), (0, lane_pad)))
        r = (jnp.arange(n_t)[:, None] * tile_h
             + jnp.arange(band_h)[None, :] - p)           # (n_t, band_h)
        valid = (r >= 0) & (r < H)
        x_feed = jnp.where(valid[None, :, :, None],
                           x_rows[:, jnp.clip(r, 0, H - 1), :],
                           jnp.zeros((), x_rows.dtype)).astype(compute_dtype)
        x_spec = pl.BlockSpec((None, None, band_h, WCin_p),
                              lambda n, t: (n, t, 0, 0))

    # ---- weight: fold kw taps + 'same' W padding into a banded matrix per kh
    #      (wmat[kh, wi*Cin+ci, w*Cout+co] = weight[co,ci,kh, wi-w+p]) and then
    #      fold the kh taps into the contraction -> (K*WCin_p, WCout).
    #      (In deployment this folded weight is built once / cached.)
    w_t = jnp.transpose(weight_oihw, (2, 3, 1, 0)).astype(jnp.float32)
    wmat = jnp.zeros((K, W, Cin, W, Cout), jnp.float32)
    for kw in range(K):
        sh = jnp.eye(W, W, k=p - kw, dtype=jnp.float32)   # sh[wi,w]=1 iff wi==w+kw-p
        wmat = wmat + jnp.einsum('uw,hio->huiwo', sh, w_t[:, kw])
    wmat = wmat.reshape(K, WCin, WCout)
    if lane_pad:
        wmat = jnp.pad(wmat, ((0, 0), (0, lane_pad), (0, 0)))
    w_fold = wmat.reshape(K * WCin_p, WCout).astype(compute_dtype)

    # ---- folded BatchNorm (inference / running statistics), f32.
    scale = (gamma / jnp.sqrt(running_var + eps)).astype(jnp.float32)
    bias = beta.astype(jnp.float32) - running_mean.astype(jnp.float32) * scale
    scale_row = jnp.tile(scale, W).reshape(1, WCout)       # [w*Cout+co]=scale[co]
    bias_row = jnp.tile(bias, W).reshape(1, WCout)

    kernel = _make_conv_bn_silu_kernel(tile_h, K)

    # ---- VMEM budget from the real per-step working set, capped at 75% of
    #      physical VMEM (96 MiB-class on v5e/v6e, 48 MiB-class on v7x).
    itemsize = jnp.dtype(compute_dtype).itemsize
    out_itemsize = jnp.dtype(out_dtype).itemsize
    band_bytes = band_h * WCin_p * itemsize
    out_bytes = tile_h * WCout * out_itemsize
    const_bytes = K * WCin_p * WCout * itemsize + 2 * WCout * 4
    working = 2 * (band_bytes + out_bytes) + 2 * const_bytes
    try:
        phys_vmem = int(pltpu.get_tpu_info().vmem_capacity_bytes)
    except Exception:
        phys_vmem = 64 << 20                               # conservative (v7x)
    vmem_limit = int(min(max(2 * working, 16 << 20), (phys_vmem * 3) // 4))

    # FLOPs actually executed by the banded matmul (~W/K x the ideal conv
    # FLOPs) + sigmoid transcendentals; bytes the kernel really moves.
    cost = pl.CostEstimate(
        flops=2 * N * H * (K * WCin_p) * WCout,
        transcendentals=N * H * WCout,
        bytes_accessed=(N * n_t * band_bytes + const_bytes
                        + N * H * WCout * out_itemsize))

    out_rows = pl.pallas_call(
        kernel,
        out_shape=jax.ShapeDtypeStruct((N, H, WCout), out_dtype),
        grid=(N, n_t),
        in_specs=[
            x_spec,
            _maybe_single_buffered_spec((K * WCin_p, WCout),
                                        lambda n, t: (0, 0), True),
            _maybe_single_buffered_spec((1, WCout), lambda n, t: (0, 0), True),
            _maybe_single_buffered_spec((1, WCout), lambda n, t: (0, 0), True),
        ],
        out_specs=pl.BlockSpec((None, tile_h, WCout), lambda n, t: (n, t, 0)),
        compiler_params=pltpu.CompilerParams(
            dimension_semantics=("parallel", "parallel"),
            vmem_limit_bytes=vmem_limit),
        cost_estimate=cost,
    )(x_feed, w_fold, scale_row, bias_row)

    if not nchw_out:
        return out_rows.reshape(N, H, W, Cout)             # NHWC (no transpose)
    return out_rows.reshape(N, H, W, Cout).transpose(0, 3, 1, 2)


def reference_conv_bn_silu(x_nchw, weight_oihw, gamma, beta, mean, var,
                           eps=1e-5):
    """Pure-JAX reference mirroring torch Conv2d(bias=False)+BN(eval)+SiLU."""
    K = weight_oihw.shape[-1]
    p = K // 2
    y = jax.lax.conv_general_dilated(
        x_nchw.astype(jnp.float32), weight_oihw.astype(jnp.float32),
        window_strides=(1, 1), padding=((p, p), (p, p)),
        dimension_numbers=('NCHW', 'OIHW', 'NCHW'))
    scale = gamma / jnp.sqrt(var + eps)
    bias = beta - mean * scale
    y = y * scale[None, :, None, None] + bias[None, :, None, None]
    return y * jax.nn.sigmoid(y)


if __name__ == "__main__":
    # Small shapes consistent with the module: Conv(c1=4, c2=8, k=3, s=1)
    N, Cin, H, W = 2, 4, 16, 16
    Cout, K = 8, 3

    key = jax.random.PRNGKey(0)
    k_x, k_w, k_g, k_b, k_m, k_v = jax.random.split(key, 6)

    x = jax.random.normal(k_x, (N, Cin, H, W), dtype=jnp.float32)
    weight = 0.1 * jax.random.normal(k_w, (Cout, Cin, K, K), dtype=jnp.float32)
    gamma = 1.0 + 0.1 * jax.random.normal(k_g, (Cout,), dtype=jnp.float32)
    beta = 0.1 * jax.random.normal(k_b, (Cout,), dtype=jnp.float32)
    running_mean = 0.1 * jax.random.normal(k_m, (Cout,), dtype=jnp.float32)
    running_var = jnp.abs(1.0 + 0.1 * jax.random.normal(k_v, (Cout,),
                                                        dtype=jnp.float32))

    ref = jax.block_until_ready(
        reference_conv_bn_silu(x, weight, gamma, beta, running_mean,
                               running_var))

    # Default path: whole-H tiles (grid (N, 1)), f32 compute, f32 output.
    out_f32 = jax.block_until_ready(
        conv_bn_silu(x, weight, gamma, beta, running_mean, running_var))
    assert out_f32.shape == (N, Cout, H, W), out_f32.shape
    assert jnp.allclose(out_f32, ref, rtol=1e-3, atol=1e-3), (
        float(jnp.max(jnp.abs(out_f32 - ref))))

    # Forced H tiling (tile_h=8 -> grid (N, 2)) exercises the overlapping-band
    # fallback path used for large H.
    out_tiled = jax.block_until_ready(
        conv_bn_silu(x, weight, gamma, beta, running_mean, running_var,
                     tile_h=8))
    assert jnp.allclose(out_tiled, ref, rtol=1e-3, atol=1e-3), (
        float(jnp.max(jnp.abs(out_tiled - ref))))

    # bf16 matmul operands + bf16 output (f32 accumulation and f32 BN/SiLU
    # epilogue) — the recommended mode on v6e/v7x.
    out_bf16 = jax.block_until_ready(
        conv_bn_silu(x, weight, gamma, beta, running_mean, running_var,
                     compute_dtype=jnp.bfloat16))
    assert out_bf16.dtype == jnp.bfloat16
    assert jnp.allclose(out_bf16.astype(jnp.float32), ref,
                        rtol=3e-2, atol=3e-2), (
        float(jnp.max(jnp.abs(out_bf16.astype(jnp.float32) - ref))))

    print("KERNEL_OK")
</pallas_src>

<mosaic_0001>
module attributes {stable_mosaic.version = 11 : i64} {
  func.func @kernel(%arg0: i32, %arg1: i32, %arg2: memref<1x18x128xf32, #tpu.memory_space<vmem>>, %arg3: memref<384x128xf32, #tpu.memory_space<vmem>>, %arg4: memref<1x128xf32, #tpu.memory_space<vmem>>, %arg5: memref<1x128xf32, #tpu.memory_space<vmem>>, %arg6: memref<1x16x128xf32, #tpu.memory_space<vmem>>) attributes {dimension_semantics = [#tpu.dimension_semantics<parallel>, #tpu.dimension_semantics<parallel>], iteration_bounds = array<i64: 2, 1>, scalar_prefetch = 0 : i64, scratch_operands = 0 : i64, tpu.core_type = #tpu.core_type<tc>, window_params = [{transform_indices = @transform_0, window_bounds = array<i64: 1, 18, 128>}, {pipeline_mode = #tpu.pipeline_mode<synchronous>, transform_indices = @transform_1, window_bounds = array<i64: 384, 128>}, {pipeline_mode = #tpu.pipeline_mode<synchronous>, transform_indices = @transform_2, window_bounds = array<i64: 1, 128>}, {pipeline_mode = #tpu.pipeline_mode<synchronous>, transform_indices = @transform_3, window_bounds = array<i64: 1, 128>}, {transform_indices = @transform_4, window_bounds = array<i64: 1, 16, 128>}]} {
    %c0 = arith.constant 0 : index
    %c0_0 = arith.constant 0 : index
    %c0_1 = arith.constant 0 : index
    %0 = vector.load %arg2[%c0, %c0_0, %c0_1] : memref<1x18x128xf32, #tpu.memory_space<vmem>>, vector<1x18x128xf32>
    %1 = vector.shape_cast %0 : vector<1x18x128xf32> to vector<18x128xf32>
    %2 = vector.extract_strided_slice %1 {offsets = [0, 0], sizes = [16, 128], strides = [1, 1]} : vector<18x128xf32> to vector<16x128xf32>
    %3 = vector.extract_strided_slice %1 {offsets = [1, 0], sizes = [16, 128], strides = [1, 1]} : vector<18x128xf32> to vector<16x128xf32>
    %4 = vector.extract_strided_slice %1 {offsets = [2, 0], sizes = [16, 128], strides = [1, 1]} : vector<18x128xf32> to vector<16x128xf32>
    %5 = tpu.concatenate %2, %3, %4 in 1 : vector<16x128xf32>, vector<16x128xf32>, vector<16x128xf32> -> vector<16x384xf32>
    %c0_2 = arith.constant 0 : index
    %c0_3 = arith.constant 0 : index
    %6 = vector.load %arg3[%c0_2, %c0_3] : memref<384x128xf32, #tpu.memory_space<vmem>>, vector<384x128xf32>
    %cst = arith.constant dense<0.000000e+00> : vector<16x128xf32>
    %7 = tpu.matmul %5, %6, %cst {dimension_numbers = #tpu.dot_dimension_numbers<[1], [0], [0], [1], [0, 0, 1, 1], [], []>} : vector<16x384xf32>, vector<384x128xf32>, vector<16x128xf32> -> vector<16x128xf32>
    %c0_4 = arith.constant 0 : index
    %c0_5 = arith.constant 0 : index
    %8 = vector.load %arg4[%c0_4, %c0_5] : memref<1x128xf32, #tpu.memory_space<vmem>>, vector<1x128xf32>
    %9 = vector.broadcast %8 : vector<1x128xf32> to vector<16x128xf32>
    %10 = arith.mulf %7, %9 : vector<16x128xf32>
    %c0_6 = arith.constant 0 : index
    %c0_7 = arith.constant 0 : index
    %11 = vector.load %arg5[%c0_6, %c0_7] : memref<1x128xf32, #tpu.memory_space<vmem>>, vector<1x128xf32>
    %12 = vector.broadcast %11 : vector<1x128xf32> to vector<16x128xf32>
    %13 = arith.addf %10, %12 : vector<16x128xf32>
    %14 = arith.negf %13 : vector<16x128xf32>
    %15 = math.exp %14 : vector<16x128xf32>
    %cst_8 = arith.constant 1.000000e+00 : f32
    %16 = vector.broadcast %cst_8 : f32 to vector<16x128xf32>
    %17 = arith.addf %16, %15 : vector<16x128xf32>
    %18 = arith.divf %16, %17 : vector<16x128xf32>
    %19 = arith.mulf %13, %18 : vector<16x128xf32>
    %c0_9 = arith.constant 0 : index
    %c0_10 = arith.constant 0 : index
    %c0_11 = arith.constant 0 : index
    %20 = vector.load %arg6[%c0_9, %c0_10, %c0_11] : memref<1x16x128xf32, #tpu.memory_space<vmem>>, vector<1x16x128xf32>
    %21 = vector.shape_cast %20 : vector<1x16x128xf32> to vector<16x128xf32>
    %22 = vector.shape_cast %19 : vector<16x128xf32> to vector<1x16x128xf32>
    tpu.vector_store %arg6[%c0_9, %c0_10, %c0_11], %22 {strides = array<i32>} : memref<1x16x128xf32, #tpu.memory_space<vmem>>, vector<1x16x128xf32>,
    return
  }
  func.func @transform_0(%arg0: i32, %arg1: i32) -> (i32, i32, i32) {
    %c0_i32 = arith.constant 0 : i32
    %c0_i32_0 = arith.constant 0 : i32
    %c0_i32_1 = arith.constant 0 : i32
    return %arg0, %c0_i32, %c0_i32_0 : i32, i32, i32
  }
  func.func @transform_1(%arg0: i32, %arg1: i32) -> (i32, i32) {
    %c0_i32 = arith.constant 0 : i32
    %c0_i32_0 = arith.constant 0 : i32
    %c0_i32_1 = arith.constant 0 : i32
    return %c0_i32, %c0_i32_0 : i32, i32
  }
  func.func @transform_2(%arg0: i32, %arg1: i32) -> (i32, i32) {
    %c0_i32 = arith.constant 0 : i32
    %c0_i32_0 = arith.constant 0 : i32
    %c0_i32_1 = arith.constant 0 : i32
    return %c0_i32, %c0_i32_0 : i32, i32
  }
  func.func @transform_3(%arg0: i32, %arg1: i32) -> (i32, i32) {
    %c0_i32 = arith.constant 0 : i32
    %c0_i32_0 = arith.constant 0 : i32
    %c0_i32_1 = arith.constant 0 : i32
    return %c0_i32, %c0_i32_0 : i32, i32
  }
  func.func @transform_4(%arg0: i32, %arg1: i32) -> (i32, i32, i32) {
    %c0_i32 = arith.constant 0 : i32
    %c0_i32_0 = arith.constant 0 : i32
    return %arg0, %arg1, %c0_i32 : i32, i32, i32
  }
}

</mosaic_0001>

<llo_original>
// kernel: tpu_custom_call.1
$region0: #{tpu_custom_call.1}
  #allocation0 [shape = 'u32[]', space=smem, size = 0x4, offset = 0x4, fixed_abs, tag = 'smem constant byte address 0x4 - core index']
  #allocation1 [shape = 'u32[72,128]{1,0:T(1,128)}', space=vmem, size = 0x9000, scoped, tag = 'internal scratch']
  %s0 = inlined_call_operand.vmem [shape: f32[2,18,128], index: 0, kind: input, shape index: {}]
  %s1 = inlined_call_operand.hbm [shape: f32[384,128], index: 1, kind: input, shape index: {}]
  %s2 = inlined_call_operand.vmem [shape: f32[1,128], index: 2, kind: input, shape index: {}]
  %s3 = inlined_call_operand.vmem [shape: f32[1,128], index: 3, kind: input, shape index: {}]
  %s4 = inlined_call_operand.hbm [shape: f32[2,16,128], index: 4, kind: output, shape index: {}]
  %s5 = sld [smem:[#allocation0]]
  $region53: #{tpu_custom_call.1} parent=0
    _
  %s7 = ssub.s32 1, %s5
  %s8 = scalar_select 0, %s7, %s5
  $region1: #{tpu_custom_call.1} parent=0
    #allocation2 [shape = 'u8[196608]{0}', space=vmem, size = 0x30000, scoped, tag = 'input window, operand 1, single buffered']
    #allocation3 [shape = 's32[2]{0}', space=sflag, size = 0x8, scoped, tag = 'scoped memory for tpu_custom_call.1']
    #allocation4 [shape = 's32[2]{0}', space=sflag, size = 0x8, scoped, tag = 'scoped memory for tpu_custom_call.1']
    #allocation5 [shape = 'u8[16384]{0}', space=vmem, size = 0x4000, scoped, tag = 'output window, operand 0']
    %9 = vsyncpa [#allocation3], 0
    %10 = vsyncpa [#allocation4], 0
    %s11 = scalar_lea.sflag [#allocation4], 1
    %12 = vsyncpa %s11, 0
    loop: start=0, step=1, limit=4
    $region2: #{tpu_custom_call.1} parent=1 // loop_pre_header
      _
    $region3: #{tpu_custom_call.1} parent=1 // loop_header
      %s14 = sphi 0, %s18
      %p15 = scmp.ge.s32.totalorder %s14, 4
      %s21 = sphi 0, %s33
      %s22 = sphi 0, %s29
      %s23 = sphi 0, %s21
      %s24 = sphi 0, %s22
      %s25 = sphi 0, %s23
      %s26 = sphi 0, %s24
      %s36 = sphi 0, %s38
      %s39 = sphi 0, %s36
      %s40 = sphi 0, %s39
      %s56 = sphi 0, %s40
      %s60 = sphi 0, %s60
      %s62 = sphi 0, %s60
      %s63 = sphi 0, %s62
      %s77 = sphi 0, %s63
      %s81 = sphi 0, %s81
      %s83 = sphi 0, %s81
      %s84 = sphi 0, %s83
      %s98 = sphi 0, %s84
      %s102 = sphi 0, %s102
      %s104 = sphi 0, %s102
      %s105 = sphi 0, %s104
      %s119 = sphi 0, %s105
      %s127 = sphi 0, %s129
      %s130 = sphi 0, %s127
      %s131 = sphi 0, %s130
      %s147 = sphi 0, %s131
    $region4: #{tpu_custom_call.1} parent=1 // loop_header_branch
      %17 = sbr.rel (%p15) target = $region8
    $region5: #{tpu_custom_call.1} parent=1 // loop_body
      %s19 = ssub.s32 %s14, 1
      %s20 = ssub.s32 %s14, 2
      %s27 = sadd.s32 1, %s22
      %p28 = scmp.ge.s32.totalorder %s27, 1
      %s29 = scalar_select %p28, 0, %s27
      %s30 = sadd.s32 1, %s21
      %s31 = scalar_select %p28, %s30, %s21
      %p32 = scmp.ge.s32.totalorder %s31, 2
      %s33 = scalar_select %p32, 0, %s31
      %s34 = ssub.s32 %s21, %s33
      %p35 = scmp.eq.s32.totalorder %s34, 0
      %s37 = sadd.s32 %s36, 1
      %s38 = scalar_select %p35, %s36, %s37
      %p41 = pneg %p35
      %p42 = scmp.eq.s32.totalorder %s14, 1
      %p43 = por %p41, %p42
      %p44 = scmp.ne.s32.totalorder %s36, %s39
      %p45 = scmp.eq.s32.totalorder %s14, 0
      %p46 = por %p44, %p45
      %p47 = scmp.ne.s32.totalorder %s36, %s39
      %p48 = scmp.eq.s32.totalorder %s19, 1
      %p49 = por %p47, %p48
      %p50 = scmp.ne.s32.totalorder %s39, %s40
      %p51 = scmp.eq.s32.totalorder %s19, 0
      %p52 = por %p50, %p51
      %p53 = scmp.ne.s32.totalorder %s39, %s40
      %p54 = scmp.eq.s32.totalorder %s20, 1
      %p55 = por %p53, %p54
      %p57 = scmp.ne.s32.totalorder %s40, %s56
      %p58 = scmp.eq.s32.totalorder %s20, 0
      %p59 = por %p57, %p58
      %s61 = sadd.s32 %s60, 1
      %p64 = scmp.eq.s32.totalorder %s14, 1
      %p65 = scmp.ne.s32.totalorder %s60, %s62
      %p66 = scmp.eq.s32.totalorder %s14, 0
      %p67 = por %p65, %p66
      %p68 = scmp.ne.s32.totalorder %s60, %s62
      %p69 = scmp.eq.s32.totalorder %s19, 1
      %p70 = por %p68, %p69
      %p71 = scmp.ne.s32.totalorder %s62, %s63
      %p72 = scmp.eq.s32.totalorder %s19, 0
      %p73 = por %p71, %p72
      %p74 = scmp.ne.s32.totalorder %s62, %s63
      %p75 = scmp.eq.s32.totalorder %s20, 1
      %p76 = por %p74, %p75
      %p78 = scmp.ne.s32.totalorder %s63, %s77
      %p79 = scmp.eq.s32.totalorder %s20, 0
      %p80 = por %p78, %p79
      %s82 = sadd.s32 %s81, 1
      %p85 = scmp.eq.s32.totalorder %s14, 1
      %p86 = scmp.ne.s32.totalorder %s81, %s83
      %p87 = scmp.eq.s32.totalorder %s14, 0
      %p88 = por %p86, %p87
      %p89 = scmp.ne.s32.totalorder %s81, %s83
      %p90 = scmp.eq.s32.totalorder %s19, 1
      %p91 = por %p89, %p90
      %p92 = scmp.ne.s32.totalorder %s83, %s84
      %p93 = scmp.eq.s32.totalorder %s19, 0
      %p94 = por %p92, %p93
      %p95 = scmp.ne.s32.totalorder %s83, %s84
      %p96 = scmp.eq.s32.totalorder %s20, 1
      %p97 = por %p95, %p96
      %p99 = scmp.ne.s32.totalorder %s84, %s98
      %p100 = scmp.eq.s32.totalorder %s20, 0
      %p101 = por %p99, %p100
      %s103 = sadd.s32 %s102, 1
      %p106 = scmp.eq.s32.totalorder %s14, 1
      %p107 = scmp.ne.s32.totalorder %s102, %s104
      %p108 = scmp.eq.s32.totalorder %s14, 0
      %p109 = por %p107, %p108
      %p110 = scmp.ne.s32.totalorder %s102, %s104
      %p111 = scmp.eq.s32.totalorder %s19, 1
      %p112 = por %p110, %p111
      %p113 = scmp.ne.s32.totalorder %s104, %s105
      %p114 = scmp.eq.s32.totalorder %s19, 0
      %p115 = por %p113, %p114
      %p116 = scmp.ne.s32.totalorder %s104, %s105
      %p117 = scmp.eq.s32.totalorder %s20, 1
      %p118 = por %p116, %p117
      %p120 = scmp.ne.s32.totalorder %s105, %s119
      %p121 = scmp.eq.s32.totalorder %s20, 0
      %p122 = por %p120, %p121
      %s123 = ssub.s32 %s21, %s33
      %s124 = ssub.s32 %s22, %s29
      %s125 = sor.u32 %s123, %s124
      %p126 = scmp.eq.s32.totalorder %s125, 0
      %s128 = sadd.s32 %s127, 1
      %s129 = scalar_select %p126, %s127, %s128
      %p132 = pneg %p126
      %p133 = scmp.eq.s32.totalorder %s14, 1
      %p134 = por %p132, %p133
      %p135 = scmp.ne.s32.totalorder %s127, %s130
      %p136 = scmp.eq.s32.totalorder %s14, 0
      %p137 = por %p135, %p136
      %p138 = scmp.ne.s32.totalorder %s127, %s130
      %p139 = scmp.eq.s32.totalorder %s19, 1
      %p140 = por %p138, %p139
      %p141 = scmp.ne.s32.totalorder %s130, %s131
      %p142 = scmp.eq.s32.totalorder %s19, 0
      %p143 = por %p141, %p142
      %p144 = scmp.ne.s32.totalorder %s130, %s131
      %p145 = scmp.eq.s32.totalorder %s20, 1
      %p146 = por %p144, %p145
      %p148 = scmp.ne.s32.totalorder %s131, %s147
      %p149 = scmp.eq.s32.totalorder %s20, 0
      %p150 = por %p148, %p149
      %p151 = scmp.le.s32.totalorder 1, %s14
      %p152 = scmp.lt.s32.totalorder %s14, 3
      %p153 = pnand %p151, %p152
      %p154 = pneg %p153
      // Predicated region
      $region9: #{tpu_custom_call.1} parent=5 // pred_check
        _
      $region10: #{tpu_custom_call.1} parent=5 // pred_check_branch
        %156 = sbr.rel (%p153) target = $region12
      $region11: #{tpu_custom_call.1} parent=5 // pred_region
        %s157 = ssub.s32 %s14, 1
        // Predicated region
        $region13: #{tpu_custom_call.1} parent=11 // pred_check
          %p158 = pneg %p73
        $region14: #{tpu_custom_call.1} parent=11 // pred_check_branch
          %160 = sbr.rel (%p158) target = $region16
        $region15: #{tpu_custom_call.1} parent=11 // pred_region
          %162 = vsyncadd [#allocation3], 0
          %s163 = sshll.u32 %s1, 4
          %s164 = int_to_ptr.hbm [resolvable:$true] %s163
          %s165 = sshll.u32 [#allocation2], 4
          %s166 = int_to_ptr.vmem [resolvable:$true] %s165
          %171 = dma.hbm_to_vmem [thread:$0]  %s164, 6144, %s166, [#allocation3], 128, 128, 8
        $region16: #{tpu_custom_call.1} parent=11 // pred_fallthru
          _
        // Predicated region
        $region17: #{tpu_custom_call.1} parent=11 // pred_check
          %p172 = pneg %p94
        $region18: #{tpu_custom_call.1} parent=11 // pred_check_branch
          %174 = sbr.rel (%p172) target = $region20
        $region19: #{tpu_custom_call.1} parent=11 // pred_region
          _
        $region20: #{tpu_custom_call.1} parent=11 // pred_fallthru
          _
        // Predicated region
        $region21: #{tpu_custom_call.1} parent=11 // pred_check
          %p175 = pneg %p115
        $region22: #{tpu_custom_call.1} parent=11 // pred_check_branch
          %177 = sbr.rel (%p175) target = $region24
        $region23: #{tpu_custom_call.1} parent=11 // pred_region
          _
        $region24: #{tpu_custom_call.1} parent=11 // pred_fallthru
          _
      $region12: #{tpu_custom_call.1} parent=5 // pred_fallthru
        _
      %p178 = scmp.lt.s32.totalorder %s14, 2
      // Predicated region
      $region25: #{tpu_custom_call.1} parent=5 // pred_check
        %p179 = pneg %p178
      $region26: #{tpu_custom_call.1} parent=5 // pred_check_branch
        %181 = sbr.rel (%p179) target = $region28
      $region27: #{tpu_custom_call.1} parent=5 // pred_region
        // Predicated region
        $region29: #{tpu_custom_call.1} parent=27 // pred_check
          %p182 = pneg %p46
        $region30: #{tpu_custom_call.1} parent=27 // pred_check_branch
          %184 = sbr.rel (%p182) target = $region32
        $region31: #{tpu_custom_call.1} parent=27 // pred_region
          %p185 = scmp.lt.s32.totalorder %s21, 1
          %s186 = scalar_select %p185, %s21, 1
          %s187 = smul.addr %s186, 3
          %s188 = smul.addr %s187, 8
          %s189 = scalar_lea.vmem %s0, %s188
        $region32: #{tpu_custom_call.1} parent=27 // pred_fallthru
          _
      $region28: #{tpu_custom_call.1} parent=5 // pred_fallthru
        _
      %p190 = scmp.le.s32.totalorder 1, %s14
      %p191 = scmp.lt.s32.totalorder %s14, 3
      %p192 = pnand %p190, %p191
      %p193 = pneg %p192
      // Predicated region
      $region33: #{tpu_custom_call.1} parent=5 // pred_check
        _
      $region34: #{tpu_custom_call.1} parent=5 // pred_check_branch
        %195 = sbr.rel (%p192) target = $region36
      $region35: #{tpu_custom_call.1} parent=5 // pred_region
        %s196 = ssub.s32 %s14, 1
        // Predicated region
        $region37: #{tpu_custom_call.1} parent=35 // pred_check
          %p197 = pneg %p73
        $region38: #{tpu_custom_call.1} parent=35 // pred_check_branch
          %199 = sbr.rel (%p197) target = $region40
        $region39: #{tpu_custom_call.1} parent=35 // pred_region
          %201 = dma.done [#allocation3], 6144
        $region40: #{tpu_custom_call.1} parent=35 // pred_fallthru
          _
        %p202 = scmp.lt.s32.totalorder %s23, 1
        %s203 = scalar_select %p202, %s23, 1
        %s204 = smul.addr %s203, 3
        %s205 = smul.addr %s204, 8
        %s206 = scalar_lea.vmem %s0, %s205
        %p207 = pneg %p52
        %p208 = pneg %p49
        %p209 = pneg %p73
        %p210 = pneg %p70
        %p211 = pneg %p94
        %p212 = pneg %p91
        %p213 = pneg %p115
        %p214 = pneg %p112
        %p215 = pneg %p143
        %p216 = pneg %p140
        %s217 = sand.u32 %s130, 1
        %s218 = scalar_lea.sflag [#allocation4], %s217
        %s219 = sand.u32 %s130, 1
        %s220 = smul.addr %s219, 16
        %s221 = scalar_lea.vmem [#allocation5], %s220
        %p222 = scmp.lt.s32.totalorder %s23, 1
        %s223 = scalar_select %p222, %s23, 1
        %s224 = smul.addr %s223, 3
        %s225 = smul.addr %s224, 8
        %s226 = scalar_lea.vmem %s0, %s225
        %s227 = smul.u32 2, %s24
        %v228 = vld [vmem:[%s226] sm:$0xff]
        %v229 = vld [vmem:[%s226 + $0x8] sm:$0xff]
        %v230 = vld [vmem:[%s226 + $0x10] sm:$0x3]
        %vm234 = vcmask 1046528
        %v235 = vrot.slane %v228, 1
        %v236 = vrot.slane %v229, 1
        %v237 = vsel %vm234, %v235, %v236
        %v238 = vrot.slane %v230, 1
        %v239 = vsel %vm234, %v236, %v238
        %vm242 = vcmask 1045504
        %v243 = vrot.slane %v228, 2
        %v244 = vrot.slane %v229, 2
        %v245 = vsel %vm242, %v243, %v244
        %v246 = vrot.slane %v230, 2
        %v247 = vsel %vm242, %v244, %v246
        %v250 = vld [vmem:[#allocation2] sm:$0xff]
        %v251 = vld [vmem:[#allocation2 + $0x8] sm:$0xff]
        %v252 = vld [vmem:[#allocation2 + $0x10] sm:$0xff]
        %v253 = vld [vmem:[#allocation2 + $0x18] sm:$0xff]
        %v254 = vld [vmem:[#allocation2 + $0x20] sm:$0xff]
        %v255 = vld [vmem:[#allocation2 + $0x28] sm:$0xff]
        %v256 = vld [vmem:[#allocation2 + $0x30] sm:$0xff]
        %v257 = vld [vmem:[#allocation2 + $0x38] sm:$0xff]
        %v258 = vld [vmem:[#allocation2 + $0x40] sm:$0xff]
        %v259 = vld [vmem:[#allocation2 + $0x48] sm:$0xff]
        %v260 = vld [vmem:[#allocation2 + $0x50] sm:$0xff]
        %v261 = vld [vmem:[#allocation2 + $0x58] sm:$0xff]
        %v262 = vld [vmem:[#allocation2 + $0x60] sm:$0xff]
        %v263 = vld [vmem:[#allocation2 + $0x68] sm:$0xff]
        %v264 = vld [vmem:[#allocation2 + $0x70] sm:$0xff]
        %v265 = vld [vmem:[#allocation2 + $0x78] sm:$0xff]
        %v266 = vld [vmem:[#allocation2 + $0x80] sm:$0xff]
        %v267 = vld [vmem:[#allocation2 + $0x88] sm:$0xff]
        %v268 = vld [vmem:[#allocation2 + $0x90] sm:$0xff]
        %v269 = vld [vmem:[#allocation2 + $0x98] sm:$0xff]
        %v270 = vld [vmem:[#allocation2 + $0xa0] sm:$0xff]
        %v271 = vld [vmem:[#allocation2 + $0xa8] sm:$0xff]
        %v272 = vld [vmem:[#allocation2 + $0xb0] sm:$0xff]
        %v273 = vld [vmem:[#allocation2 + $0xb8] sm:$0xff]
        %v274 = vld [vmem:[#allocation2 + $0xc0] sm:$0xff]
        %v275 = vld [vmem:[#allocation2 + $0xc8] sm:$0xff]
        %v276 = vld [vmem:[#allocation2 + $0xd0] sm:$0xff]
        %v277 = vld [vmem:[#allocation2 + $0xd8] sm:$0xff]
        %v278 = vld [vmem:[#allocation2 + $0xe0] sm:$0xff]
        %v279 = vld [vmem:[#allocation2 + $0xe8] sm:$0xff]
        %v280 = vld [vmem:[#allocation2 + $0xf0] sm:$0xff]
        %v281 = vld [vmem:[#allocation2 + $0xf8] sm:$0xff]
        %v282 = vld [vmem:[#allocation2 + $0x100] sm:$0xff]
        %v283 = vld [vmem:[#allocation2 + $0x108] sm:$0xff]
        %v284 = vld [vmem:[#allocation2 + $0x110] sm:$0xff]
        %v285 = vld [vmem:[#allocation2 + $0x118] sm:$0xff]
        %v286 = vld [vmem:[#allocation2 + $0x120] sm:$0xff]
        %v287 = vld [vmem:[#allocation2 + $0x128] sm:$0xff]
        %v288 = vld [vmem:[#allocation2 + $0x130] sm:$0xff]
        %v289 = vld [vmem:[#allocation2 + $0x138] sm:$0xff]
        %v290 = vld [vmem:[#allocation2 + $0x140] sm:$0xff]
        %v291 = vld [vmem:[#allocation2 + $0x148] sm:$0xff]
        %v292 = vld [vmem:[#allocation2 + $0x150] sm:$0xff]
        %v293 = vld [vmem:[#allocation2 + $0x158] sm:$0xff]
        %v294 = vld [vmem:[#allocation2 + $0x160] sm:$0xff]
        %v295 = vld [vmem:[#allocation2 + $0x168] sm:$0xff]
        %v296 = vld [vmem:[#allocation2 + $0x170] sm:$0xff]
        %v297 = vld [vmem:[#allocation2 + $0x178] sm:$0xff]
        %298 = vmatpush.msra.mxu0 %v265
        %299 = vmatpush.msra.mxu0 %v264
        %300 = vmatpush.msra.mxu0 %v263
        %301 = vmatpush.msra.mxu0 %v262
        %302 = vmatpush.msra.mxu0 %v261
        %303 = vmatpush.msra.mxu0 %v260
        %304 = vmatpush.msra.mxu0 %v259
        %305 = vmatpush.msra.mxu0 %v258
        %306 = vmatpush.msra.mxu0 %v257
        %307 = vmatpush.msra.mxu0 %v256
        %308 = vmatpush.msra.mxu0 %v255
        %309 = vmatpush.msra.mxu0 %v254
        %310 = vmatpush.msra.mxu0 %v253
        %311 = vmatpush.msra.mxu0 %v252
        %312 = vmatpush.msra.mxu0 %v251
        %313 = vmatpush.msra.mxu0 %v250
        %314 = vmatmul.f32.gmra.mxu0 %v228
        %v315 = vpop.f32.mrf.mxu0
        %v316 = vadd.f32 0.0, %v315
        %317 = vmatmul.f32.gmra.mxu0 %v229
        %v318 = vpop.f32.mrf.mxu0
        %v319 = vadd.f32 0.0, %v318
        %320 = vdwg.mxu0
        %321 = vmatpush.msra.mxu0 %v281
        %322 = vmatpush.msra.mxu0 %v280
        %323 = vmatpush.msra.mxu0 %v279
        %324 = vmatpush.msra.mxu0 %v278
        %325 = vmatpush.msra.mxu0 %v277
        %326 = vmatpush.msra.mxu0 %v276
        %327 = vmatpush.msra.mxu0 %v275
        %328 = vmatpush.msra.mxu0 %v274
        %329 = vmatpush.msra.mxu0 %v273
        %330 = vmatpush.msra.mxu0 %v272
        %331 = vmatpush.msra.mxu0 %v271
        %332 = vmatpush.msra.mxu0 %v270
        %333 = vmatpush.msra.mxu0 %v269
        %334 = vmatpush.msra.mxu0 %v268
        %335 = vmatpush.msra.mxu0 %v267
        %336 = vmatpush.msra.mxu0 %v266
        %337 = vmatmul.f32.gmra.mxu0 %v237
        %v338 = vpop.f32.mrf.mxu0
        %v339 = vadd.f32 %v316, %v338
        %340 = vmatmul.f32.gmra.mxu0 %v239
        %v341 = vpop.f32.mrf.mxu0
        %v342 = vadd.f32 %v319, %v341
        %343 = vdwg.mxu0
        %344 = vmatpush.msra.mxu0 %v297
        %345 = vmatpush.msra.mxu0 %v296
        %346 = vmatpush.msra.mxu0 %v295
        %347 = vmatpush.msra.mxu0 %v294
        %348 = vmatpush.msra.mxu0 %v293
        %349 = vmatpush.msra.mxu0 %v292
        %350 = vmatpush.msra.mxu0 %v291
        %351 = vmatpush.msra.mxu0 %v290
        %352 = vmatpush.msra.mxu0 %v289
        %353 = vmatpush.msra.mxu0 %v288
        %354 = vmatpush.msra.mxu0 %v287
        %355 = vmatpush.msra.mxu0 %v286
        %356 = vmatpush.msra.mxu0 %v285
        %357 = vmatpush.msra.mxu0 %v284
        %358 = vmatpush.msra.mxu0 %v283
        %359 = vmatpush.msra.mxu0 %v282
        %360 = vmatmul.f32.gmra.mxu0 %v245
        %v361 = vpop.f32.mrf.mxu0
        %v362 = vadd.f32 %v339, %v361
        %363 = vmatmul.f32.gmra.mxu0 %v247
        %v364 = vpop.f32.mrf.mxu0
        %v365 = vadd.f32 %v342, %v364
        %366 = vdwg.mxu0
        %v367 = vld [vmem:[%s2] sm:$0x1]
        %v369 = vperm.slane %v367, 0
        %v371 = vmul.f32 %v362, %v369
        %v372 = vmul.f32 %v365, %v369
        %v373 = vld [vmem:[%s3] sm:$0x1]
        %v375 = vperm.slane %v373, 0
        %v377 = vadd.f32 %v371, %v375
        %v378 = vadd.f32 %v372, %v375
        %v379 = vxor.u32 %v377, 2147483648
        %v380 = vxor.u32 %v378, 2147483648
        %v381 = vmul.f32 %v379, 1.442695
        %v382 = vpow.pop %v381
        %v383 = vmul.f32 %v380, 1.442695
        %v384 = vpow.pop %v383
        %v385 = vadd.f32 %v382, 1.0
        %v386 = vadd.f32 %v384, 1.0
        %v387 = vrcp.pop %v385
        %v388 = vmul.f32 %v385, %v387
        %v389 = vsub.f32 1.0, %v388
        %v390 = vmul.f32 %v387, %v389
        %v391 = vadd.f32 %v387, %v390
        %vm392 = vweird.f32 %v385
        %vm393 = vweird.f32 %v387
        %vm394 = vmor %vm392, %vm393
        %v395 = vsel %vm394, %v387, %v391
        %v396 = vand.u32 2147483647, %v385
        %vm397 = vcmp.eq.f32.partialorder %v396, 8.507059e+37
        %v398 = vand.u32 %v385, 2147483648
        %v399 = vor.u32 1.1754944e-38, %v398
        %v400 = vsel %vm397, %v399, %v395
        %v401 = vmul.f32 1.0, %v400
        %v402 = vrcp.pop %v386
        %v403 = vmul.f32 %v386, %v402
        %v404 = vsub.f32 1.0, %v403
        %v405 = vmul.f32 %v402, %v404
        %v406 = vadd.f32 %v402, %v405
        %vm407 = vweird.f32 %v386
        %vm408 = vweird.f32 %v402
        %vm409 = vmor %vm407, %vm408
        %v410 = vsel %vm409, %v402, %v406
        %v411 = vand.u32 2147483647, %v386
        %vm412 = vcmp.eq.f32.partialorder %v411, 8.507059e+37
        %v413 = vand.u32 %v386, 2147483648
        %v414 = vor.u32 1.1754944e-38, %v413
        %v415 = vsel %vm412, %v414, %v410
        %v416 = vmul.f32 1.0, %v415
        %v417 = vmul.f32 %v377, %v401
        %v418 = vmul.f32 %v378, %v416
        %419 = vst [vmem:[%s221] sm:$0xff] %v417
        %420 = vst [vmem:[%s221 + $0x8] sm:$0xff] %v418
        %s421 = sand.u32 %s130, 1
        %s422 = scalar_lea.sflag [#allocation4], %s421
        %s423 = sand.u32 %s130, 1
        %s424 = smul.addr %s423, 16
        %s425 = scalar_lea.vmem [#allocation5], %s424
        // Predicated region
        $region41: #{tpu_custom_call.1} parent=35 // pred_check
          %p426 = pneg %p140
        $region42: #{tpu_custom_call.1} parent=35 // pred_check_branch
          %428 = sbr.rel (%p426) target = $region44
        $region43: #{tpu_custom_call.1} parent=35 // pred_region
          %s429 = smul.u32 2, %s24
          %431 = vsyncadd %s422, 0
          %s432 = smul.addr %s23, 2
          %s433 = sadd.s32 %s429, %s432
          %s434 = smul.addr %s433, 8
          %s435 = scalar_lea.hbm %s4, %s434
          %s436 = sshll.u32 %s425, 4
          %s437 = int_to_ptr.vmem [resolvable:$true] %s436
          %s438 = sshll.u32 %s435, 4
          %s439 = int_to_ptr.hbm [resolvable:$true] %s438
          %444 = dma.vmem_to_hbm [thread:$0]  %s437, 256, %s439, %s422, 128, 128, 8
        $region44: #{tpu_custom_call.1} parent=35 // pred_fallthru
          _
      $region36: #{tpu_custom_call.1} parent=5 // pred_fallthru
        _
      %p445 = scmp.le.s32.totalorder 2, %s14
      // Predicated region
      $region45: #{tpu_custom_call.1} parent=5 // pred_check
        %p446 = pneg %p445
      $region46: #{tpu_custom_call.1} parent=5 // pred_check_branch
        %448 = sbr.rel (%p446) target = $region48
      $region47: #{tpu_custom_call.1} parent=5 // pred_region
        %s449 = ssub.s32 %s14, 2
        // Predicated region
        $region49: #{tpu_custom_call.1} parent=47 // pred_check
          %p450 = pneg %p146
        $region50: #{tpu_custom_call.1} parent=47 // pred_check_branch
          %452 = sbr.rel (%p450) target = $region52
        $region51: #{tpu_custom_call.1} parent=47 // pred_region
          %s453 = sand.u32 %s131, 1
          %s454 = scalar_lea.sflag [#allocation4], %s453
          %s455 = sand.u32 %s131, 1
          %s456 = smul.addr %s455, 16
          %s457 = scalar_lea.vmem [#allocation5], %s456
          %459 = dma.done %s454, 256
        $region52: #{tpu_custom_call.1} parent=47 // pred_fallthru
          _
      $region48: #{tpu_custom_call.1} parent=5 // pred_fallthru
        _
    $region6: #{tpu_custom_call.1} parent=1 // loop_footer
      %s18 = sadd.s32 1, %s14
    $region7: #{tpu_custom_call.1} parent=1 // loop_footer_branch
      %13 = sbr.rel target = $region3
    $region8: #{tpu_custom_call.1} parent=1 // loop_exit
      _
    %460 = vsyncpa [#allocation3], 1
    %s461 = scalar_lea.sflag [#allocation3], 1
    %462 = vsyncpa %s461, 1
    %463 = vsyncpa [#allocation4], 1
    %s464 = scalar_lea.sflag [#allocation4], 1
    %465 = vsyncpa %s464, 1

</llo_original>
